<compile_context>
chip_gen: v7x
topology: tpu7x:2x2x1
jax: 0.10.0
libtpu: 0.0.40
codegen_flags: <defaults>
</compile_context>

<pallas_src>
import jax
import jax.numpy as jnp
from jax.experimental import pallas as pl
from jax.experimental.pallas import tpu as pltpu


MATMUL_DTYPE = jnp.bfloat16          # MXU-native on v5e/v6e/v7x; f32 path kept via flag
_HIGHEST = jax.lax.Precision.HIGHEST


# ----------------------------------------------------------------------------
# Fused Pallas kernel: A3TGCN recurrence + attention accumulation + edge decoder
# ----------------------------------------------------------------------------
def _a3tgcn_fused_kernel(attn_ref,            # SMEM [P] f32: softmax(attention)
                         x_ref,               # VMEM [P, N, F]
                         a_ref,               # VMEM [N, N]  (A_hat, sym-normalized)
                         w_zr_ref, b_zr_ref,  # [F+H, 2H], [1, 2H]  folded z|r gate
                         w_ht_ref, b_ht_ref,  # [F+H, H],  [1, H]   folded h~ gate
                         idx_ref,             # [2E, 1] int32 (src rows then dst rows)
                         w1_ref, b1_ref,      # [2H, H], [1, H]     decoder lin1 (stacked)
                         w2t_ref, b2_ref,     # [1, H], [1, 1]      decoder lin2 (transposed)
                         out_ref):            # [1, E]  (lane-dense)
    periods, n, _ = x_ref.shape
    hid = w_ht_ref.shape[1]

    def mm(lhs, rhs):
        return jnp.dot(lhs.astype(MATMUL_DTYPE), rhs.astype(MATMUL_DTYPE),
                       preferred_element_type=jnp.float32)

    a = a_ref[...]
    w_zr = w_zr_ref[...]
    b_zr = b_zr_ref[...]
    w_ht = w_ht_ref[...]
    b_ht = b_ht_ref[...]

    h = jnp.zeros((n, hid), jnp.float32)
    hacc = jnp.zeros((n, hid), jnp.float32)

    # Statically unrolled recurrence (periods is a tiny compile-time constant).
    # TODO(synk): switch to lax.fori_loop(..., unroll=True) with VMEM-scratch h/hacc if
    #             periods ever grows enough for live-range pressure to matter.
    for t in range(periods):
        ax = mm(a, x_ref[t])                                    # [N, F]  (A@X first: F << 3H)
        axh = jnp.concatenate([ax, h], axis=1)                  # [N, F+H]
        zr = jax.nn.sigmoid(mm(axh, w_zr) + b_zr)               # [N, 2H]  (z | r)
        z = zr[:, :hid]
        r = zr[:, hid:]
        axhr = jnp.concatenate([ax, h * r], axis=1)             # [N, F+H]
        h_tilde = jnp.tanh(mm(axhr, w_ht) + b_ht)               # [N, H]
        h = z * h + (1.0 - z) * h_tilde
        hacc = hacc + attn_ref[t] * h                           # attention-weighted accum

    # ---- Edge decoder (fused, runs once) ----
    two_e = idx_ref.shape[0]
    e = two_e // 2
    iota = jax.lax.broadcasted_iota(jnp.int32, (two_e, n), 1)
    oh = jnp.where(iota == idx_ref[...], 1.0, 0.0)              # [2E, N] one-hot gather matrix
    both = mm(oh, hacc)                                         # [2E, H]  gather via one matmul
    # E is a multiple of 8 -> tile-aligned sublane split.
    edge_emb = jnp.concatenate([both[:e], both[e:]], axis=1)    # [E, 2H] = [emb[src] | emb[dst]]
    hh = jnp.maximum(mm(edge_emb, w1_ref[...]) + b1_ref[...], 0.0)   # [E, H] relu(lin1)
    # Lane-dense [1, E] output: contract the H dims of w2^T [1,H] with hh [E,H].
    out = jax.lax.dot_general(w2t_ref[...].astype(MATMUL_DTYPE), hh.astype(MATMUL_DTYPE),
                              dimension_numbers=(((1,), (1,)), ((), ())),
                              preferred_element_type=jnp.float32)     # [1, E]
    out_ref[...] = out + b2_ref[...]


# ----------------------------------------------------------------------------
# Graph glue (plain JAX): dense symmetric GCN normalization, no self loops
# ----------------------------------------------------------------------------
def gcn_norm_dense(edge_index, num_nodes):
    src = edge_index[0]
    dst = edge_index[1]
    ew = jnp.ones(src.shape[0], dtype=jnp.float32)
    deg = jnp.zeros((num_nodes,), jnp.float32).at[dst].add(ew)
    dinv = jnp.where(deg > 0, 1.0 / jnp.sqrt(jnp.where(deg > 0, deg, 1.0)), 0.0)
    norm = dinv[src] * ew * dinv[dst]
    a_hat = jnp.zeros((num_nodes, num_nodes), jnp.float32).at[dst, src].add(norm)
    return a_hat


# ----------------------------------------------------------------------------
# Full ModelA3TGCN forward: one fused, grid-free pallas_call
# ----------------------------------------------------------------------------
def model_forward(x, edge_index, edge_weights_index, params, num_nodes):
    n, f = x.shape
    x3 = x[:, :, None]                                   # snapshot.x.unsqueeze(2): [N, F, 1]
    periods = x3.shape[2]
    x_seq = jnp.transpose(x3, (2, 0, 1)).astype(MATMUL_DTYPE)     # [P, N, F]

    a_hat = gcn_norm_dense(edge_index, num_nodes).astype(MATMUL_DTYPE)
    hid = params["wz"].shape[1]

    def hdot(a, b):
        return jnp.dot(a, b, precision=_HIGHEST)

    # Fold GCNConv weights into the conv halves of the gate Linears (exact algebra:
    # ((A@X)@W + b) @ Wc = (A@X)@(W@Wc) + b@Wc), then stack conv-part over hidden-part so
    # each gate is ONE matmul against concat([A@X, h], axis=1).
    wz_f = hdot(params["wz"], params["wlz_c"])
    bz_f = hdot(params["bz"], params["wlz_c"]) + params["blz"]
    wr_f = hdot(params["wr"], params["wlr_c"])
    br_f = hdot(params["br"], params["wlr_c"]) + params["blr"]
    wh_f = hdot(params["wh"], params["wlh_c"])
    bh_f = hdot(params["bh"], params["wlh_c"]) + params["blh"]

    w_zr = jnp.concatenate(
        [jnp.concatenate([wz_f, wr_f], axis=1),                      # conv part   [F, 2H]
         jnp.concatenate([params["wlz_h"], params["wlr_h"]], axis=1)  # hidden part [H, 2H]
         ], axis=0).astype(MATMUL_DTYPE)                              # [F+H, 2H]
    b_zr = jnp.concatenate([bz_f, br_f], axis=1)                      # [1, 2H] f32
    w_ht = jnp.concatenate([wh_f, params["wlh_h"]], axis=0).astype(MATMUL_DTYPE)   # [F+H, H]
    b_ht = bh_f                                                       # [1, H] f32

    w1 = jnp.concatenate([params["w1s"], params["w1d"]], axis=0).astype(MATMUL_DTYPE)  # [2H, H]
    b1 = params["b1"]
    w2t = params["w2"].T.astype(MATMUL_DTYPE)                        # [1, H]
    b2 = params["b2"]

    attn = jax.nn.softmax(params["attention"]).astype(jnp.float32)   # [P]

    e = edge_weights_index.shape[1]
    idx = jnp.concatenate([edge_weights_index[0], edge_weights_index[1]]
                          ).astype(jnp.int32).reshape(2 * e, 1)       # [2E, 1]

    args = (attn, x_seq, a_hat, w_zr, b_zr, w_ht, b_ht, idx, w1, b1, w2t, b2)

    vmem = pl.BlockSpec(memory_space=pltpu.MemorySpace.VMEM)
    smem = pl.BlockSpec(memory_space=pltpu.MemorySpace.SMEM)
    in_specs = [smem] + [vmem] * (len(args) - 1)

    flops = (2 * periods * (n * n * f + n * (f + hid) * 2 * hid + n * (f + hid) * hid)
             + 2 * (2 * e * n * hid + e * 2 * hid * hid + e * hid))
    transcendentals = periods * n * 3 * hid
    bytes_accessed = int(sum(int(v.size) * v.dtype.itemsize for v in args) + e * 4)

    out = pl.pallas_call(
        _a3tgcn_fused_kernel,
        out_shape=jax.ShapeDtypeStruct((1, e), jnp.float32),
        in_specs=in_specs,
        out_specs=pl.BlockSpec(memory_space=pltpu.MemorySpace.VMEM),
        compiler_params=pltpu.CompilerParams(vmem_limit_bytes=32 * 1024 * 1024),
        cost_estimate=pl.CostEstimate(flops=flops, transcendentals=transcendentals,
                                      bytes_accessed=bytes_accessed),
    )(*args)
    return out.reshape(-1)


# ----------------------------------------------------------------------------
# Pure-JAX reference (unfused, f32 HIGHEST) for a numeric sanity check
# ----------------------------------------------------------------------------
def _hdot(a, b):
    return jnp.dot(a, b, precision=_HIGHEST)


def reference_forward(x, edge_index, edge_weights_index, params, num_nodes):
    x3 = x[:, :, None]
    a_hat = gcn_norm_dense(edge_index, num_nodes)
    probs = jax.nn.softmax(params["attention"])
    hid = params["wz"].shape[1]
    h = jnp.zeros((num_nodes, hid), jnp.float32)
    h_accum = jnp.zeros_like(h)
    for t in range(x3.shape[2]):
        xt = x3[:, :, t]
        conv_z = _hdot(a_hat, _hdot(xt, params["wz"])) + params["bz"]
        conv_r = _hdot(a_hat, _hdot(xt, params["wr"])) + params["br"]
        conv_h = _hdot(a_hat, _hdot(xt, params["wh"])) + params["bh"]
        z = jax.nn.sigmoid(_hdot(conv_z, params["wlz_c"]) + _hdot(h, params["wlz_h"]) + params["blz"])
        r = jax.nn.sigmoid(_hdot(conv_r, params["wlr_c"]) + _hdot(h, params["wlr_h"]) + params["blr"])
        ht = jnp.tanh(_hdot(conv_h, params["wlh_c"]) + _hdot(h * r, params["wlh_h"]) + params["blh"])
        h = z * h + (1.0 - z) * ht
        h_accum = h_accum + probs[t] * h
    se = h_accum[edge_weights_index[0]]
    de = h_accum[edge_weights_index[1]]
    hh = jnp.maximum(_hdot(se, params["w1s"]) + _hdot(de, params["w1d"]) + params["b1"], 0.0)
    return (_hdot(hh, params["w2"]) + params["b2"]).reshape(-1)


# ----------------------------------------------------------------------------
# Deterministic parameter init
# ----------------------------------------------------------------------------
def init_params(key, in_channels, hidden, periods):
    ks = jax.random.split(key, 24)
    k = iter(ks)

    def w(kk, shape, scale=0.2):
        return (scale * jax.random.normal(kk, shape)).astype(jnp.float32)

    params = {
        # GCNConv weights ([F, H]) + biases ([1, H]) for z / r / h gates
        "wz": w(next(k), (in_channels, hidden)), "bz": w(next(k), (1, hidden), 0.05),
        "wr": w(next(k), (in_channels, hidden)), "br": w(next(k), (1, hidden), 0.05),
        "wh": w(next(k), (in_channels, hidden)), "bh": w(next(k), (1, hidden), 0.05),
        # Linear(2H -> H) split into conv-part and hidden-part halves
        "wlz_c": w(next(k), (hidden, hidden)), "wlz_h": w(next(k), (hidden, hidden)),
        "blz": w(next(k), (1, hidden), 0.05),
        "wlr_c": w(next(k), (hidden, hidden)), "wlr_h": w(next(k), (hidden, hidden)),
        "blr": w(next(k), (1, hidden), 0.05),
        "wlh_c": w(next(k), (hidden, hidden)), "wlh_h": w(next(k), (hidden, hidden)),
        "blh": w(next(k), (1, hidden), 0.05),
        # A3TGCN attention over periods
        "attention": jax.random.uniform(next(k), (periods,), dtype=jnp.float32),
        # EdgeDecoder: Linear(2H -> H) split, Linear(H -> 1)
        "w1s": w(next(k), (hidden, hidden)), "w1d": w(next(k), (hidden, hidden)),
        "b1": w(next(k), (1, hidden), 0.05),
        "w2": w(next(k), (hidden, 1)), "b2": w(next(k), (1, 1), 0.05),
    }
    return params


if __name__ == "__main__":
    key = jax.random.PRNGKey(0)
    k_par, k_x, k_ei, k_ew = jax.random.split(key, 4)

    num_nodes = 16
    in_channels = 8
    hidden = 32
    periods = 1              # snapshot.x.unsqueeze(2) gives a single period
    num_edges = 48
    num_pred_edges = 24      # multiple of 8 -> tile-aligned src/dst split in the decoder

    params = init_params(k_par, in_channels, hidden, periods)

    x = jax.random.normal(k_x, (num_nodes, in_channels), dtype=jnp.float32)
    edge_index = jax.random.randint(k_ei, (2, num_edges), 0, num_nodes, dtype=jnp.int32)
    edge_weights_index = jax.random.randint(k_ew, (2, num_pred_edges), 0, num_nodes, dtype=jnp.int32)

    out = model_forward(x, edge_index, edge_weights_index, params, num_nodes)
    out = jax.block_until_ready(out)

    ref = jax.block_until_ready(
        reference_forward(x, edge_index, edge_weights_index, params, num_nodes))

    assert out.shape == (num_pred_edges,)
    # bf16 MXU inputs -> relaxed tolerance (f32 MATMUL_DTYPE passes at 1e-4).
    assert jnp.allclose(out, ref, atol=3e-2, rtol=3e-2), (out, ref)
    print("KERNEL_OK")
</pallas_src>

<mosaic_0001>
module attributes {stable_mosaic.version = 11 : i64} {
  func.func @_a3tgcn_fused_kernel(%arg0: memref<1xf32, #tpu.memory_space<smem>>, %arg1: memref<1x16x8xbf16, #tpu.memory_space<vmem>>, %arg2: memref<16x16xbf16, #tpu.memory_space<vmem>>, %arg3: memref<40x64xbf16, #tpu.memory_space<vmem>>, %arg4: memref<1x64xf32, #tpu.memory_space<vmem>>, %arg5: memref<40x32xbf16, #tpu.memory_space<vmem>>, %arg6: memref<1x32xf32, #tpu.memory_space<vmem>>, %arg7: memref<48x1xi32, #tpu.memory_space<vmem>>, %arg8: memref<64x32xbf16, #tpu.memory_space<vmem>>, %arg9: memref<1x32xf32, #tpu.memory_space<vmem>>, %arg10: memref<1x32xbf16, #tpu.memory_space<vmem>>, %arg11: memref<1x1xf32, #tpu.memory_space<vmem>>, %arg12: memref<1x24xf32, #tpu.memory_space<vmem>>) attributes {dimension_semantics = [], scalar_prefetch = 0 : i64, scratch_operands = 0 : i64, tpu.core_type = #tpu.core_type<tc>} {
    %c0 = arith.constant 0 : index
    %c0_0 = arith.constant 0 : index
    %0 = vector.load %arg2[%c0, %c0_0] : memref<16x16xbf16, #tpu.memory_space<vmem>>, vector<16x16xbf16>
    %c0_1 = arith.constant 0 : index
    %c0_2 = arith.constant 0 : index
    %1 = vector.load %arg3[%c0_1, %c0_2] : memref<40x64xbf16, #tpu.memory_space<vmem>>, vector<40x64xbf16>
    %c0_3 = arith.constant 0 : index
    %c0_4 = arith.constant 0 : index
    %2 = vector.load %arg4[%c0_3, %c0_4] : memref<1x64xf32, #tpu.memory_space<vmem>>, vector<1x64xf32>
    %c0_5 = arith.constant 0 : index
    %c0_6 = arith.constant 0 : index
    %3 = vector.load %arg5[%c0_5, %c0_6] : memref<40x32xbf16, #tpu.memory_space<vmem>>, vector<40x32xbf16>
    %c0_7 = arith.constant 0 : index
    %c0_8 = arith.constant 0 : index
    %4 = vector.load %arg6[%c0_7, %c0_8] : memref<1x32xf32, #tpu.memory_space<vmem>>, vector<1x32xf32>
    %cst = arith.constant 0.000000e+00 : f32
    %5 = vector.broadcast %cst : f32 to vector<16x32xf32>
    %cst_9 = arith.constant 0.000000e+00 : f32
    %6 = vector.broadcast %cst_9 : f32 to vector<16x32xf32>
    %c0_10 = arith.constant 0 : index
    %c0_11 = arith.constant 0 : index
    %c0_12 = arith.constant 0 : index
    %7 = vector.load %arg1[%c0_10, %c0_11, %c0_12] : memref<1x16x8xbf16, #tpu.memory_space<vmem>>, vector<1x16x8xbf16>
    %8 = vector.shape_cast %7 : vector<1x16x8xbf16> to vector<16x8xbf16>
    %cst_13 = arith.constant dense<0.000000e+00> : vector<16x8xf32>
    %9 = tpu.matmul %0, %8, %cst_13 {dimension_numbers = #tpu.dot_dimension_numbers<[1], [0], [0], [1], [0, 0, 1, 1], [], []>} : vector<16x16xbf16>, vector<16x8xbf16>, vector<16x8xf32> -> vector<16x8xf32>
    %10 = tpu.concatenate %9, %5 in 1 : vector<16x8xf32>, vector<16x32xf32> -> vector<16x40xf32>
    %11 = arith.truncf %10 : vector<16x40xf32> to vector<16x40xbf16>
    %cst_14 = arith.constant dense<0.000000e+00> : vector<16x64xf32>
    %12 = tpu.matmul %11, %1, %cst_14 {dimension_numbers = #tpu.dot_dimension_numbers<[1], [0], [0], [1], [0, 0, 1, 1], [], []>} : vector<16x40xbf16>, vector<40x64xbf16>, vector<16x64xf32> -> vector<16x64xf32>
    %13 = vector.broadcast %2 : vector<1x64xf32> to vector<16x64xf32>
    %14 = arith.addf %12, %13 : vector<16x64xf32>
    %15 = arith.negf %14 : vector<16x64xf32>
    %16 = math.exp %15 : vector<16x64xf32>
    %cst_15 = arith.constant 1.000000e+00 : f32
    %17 = vector.broadcast %cst_15 : f32 to vector<16x64xf32>
    %18 = arith.addf %17, %16 : vector<16x64xf32>
    %19 = arith.divf %17, %18 : vector<16x64xf32>
    %20 = vector.extract_strided_slice %19 {offsets = [0, 0], sizes = [16, 32], strides = [1, 1]} : vector<16x64xf32> to vector<16x32xf32>
    %21 = vector.extract_strided_slice %19 {offsets = [0, 32], sizes = [16, 32], strides = [1, 1]} : vector<16x64xf32> to vector<16x32xf32>
    %22 = arith.mulf %5, %21 : vector<16x32xf32>
    %23 = tpu.concatenate %9, %22 in 1 : vector<16x8xf32>, vector<16x32xf32> -> vector<16x40xf32>
    %24 = arith.truncf %23 : vector<16x40xf32> to vector<16x40xbf16>
    %cst_16 = arith.constant dense<0.000000e+00> : vector<16x32xf32>
    %25 = tpu.matmul %24, %3, %cst_16 {dimension_numbers = #tpu.dot_dimension_numbers<[1], [0], [0], [1], [0, 0, 1, 1], [], []>} : vector<16x40xbf16>, vector<40x32xbf16>, vector<16x32xf32> -> vector<16x32xf32>
    %26 = vector.broadcast %4 : vector<1x32xf32> to vector<16x32xf32>
    %27 = arith.addf %25, %26 : vector<16x32xf32>
    %28 = math.tanh %27 : vector<16x32xf32>
    %29 = arith.mulf %20, %5 : vector<16x32xf32>
    %cst_17 = arith.constant 1.000000e+00 : f32
    %30 = vector.broadcast %cst_17 : f32 to vector<16x32xf32>
    %31 = arith.subf %30, %20 : vector<16x32xf32>
    %32 = arith.mulf %31, %28 : vector<16x32xf32>
    %33 = arith.addf %29, %32 : vector<16x32xf32>
    %c0_18 = arith.constant 0 : index
    %34 = memref.load %arg0[%c0_18] : memref<1xf32, #tpu.memory_space<smem>>
    %35 = vector.broadcast %34 : f32 to vector<16x32xf32>
    %36 = arith.mulf %35, %33 : vector<16x32xf32>
    %37 = arith.addf %6, %36 : vector<16x32xf32>
    %38 = tpu.iota {dimensions = array<i32: 1>} : vector<48x16xi32>
    %c0_19 = arith.constant 0 : index
    %c0_20 = arith.constant 0 : index
    %39 = vector.load %arg7[%c0_19, %c0_20] : memref<48x1xi32, #tpu.memory_space<vmem>>, vector<48x1xi32>
    %40 = vector.broadcast %39 : vector<48x1xi32> to vector<48x16xi32>
    %41 = arith.cmpi eq, %38, %40 : vector<48x16xi32>
    %cst_21 = arith.constant 1.000000e+00 : f32
    %cst_22 = arith.constant 0.000000e+00 : f32
    %42 = vector.broadcast %cst_21 : f32 to vector<48x16xf32>
    %43 = vector.broadcast %cst_22 : f32 to vector<48x16xf32>
    %44 = arith.select %41, %42, %43 : vector<48x16xi1>, vector<48x16xf32>
    %45 = arith.truncf %44 : vector<48x16xf32> to vector<48x16xbf16>
    %46 = arith.truncf %37 : vector<16x32xf32> to vector<16x32xbf16>
    %cst_23 = arith.constant dense<0.000000e+00> : vector<48x32xf32>
    %47 = tpu.matmul %45, %46, %cst_23 {dimension_numbers = #tpu.dot_dimension_numbers<[1], [0], [0], [1], [0, 0, 1, 1], [], []>} : vector<48x16xbf16>, vector<16x32xbf16>, vector<48x32xf32> -> vector<48x32xf32>
    %48 = vector.extract_strided_slice %47 {offsets = [0, 0], sizes = [24, 32], strides = [1, 1]} : vector<48x32xf32> to vector<24x32xf32>
    %49 = vector.extract_strided_slice %47 {offsets = [24, 0], sizes = [24, 32], strides = [1, 1]} : vector<48x32xf32> to vector<24x32xf32>
    %50 = tpu.concatenate %48, %49 in 1 : vector<24x32xf32>, vector<24x32xf32> -> vector<24x64xf32>
    %c0_24 = arith.constant 0 : index
    %c0_25 = arith.constant 0 : index
    %51 = vector.load %arg8[%c0_24, %c0_25] : memref<64x32xbf16, #tpu.memory_space<vmem>>, vector<64x32xbf16>
    %52 = arith.truncf %50 : vector<24x64xf32> to vector<24x64xbf16>
    %cst_26 = arith.constant dense<0.000000e+00> : vector<24x32xf32>
    %53 = tpu.matmul %52, %51, %cst_26 {dimension_numbers = #tpu.dot_dimension_numbers<[1], [0], [0], [1], [0, 0, 1, 1], [], []>} : vector<24x64xbf16>, vector<64x32xbf16>, vector<24x32xf32> -> vector<24x32xf32>
    %c0_27 = arith.constant 0 : index
    %c0_28 = arith.constant 0 : index
    %54 = vector.load %arg9[%c0_27, %c0_28] : memref<1x32xf32, #tpu.memory_space<vmem>>, vector<1x32xf32>
    %55 = vector.broadcast %54 : vector<1x32xf32> to vector<24x32xf32>
    %56 = arith.addf %53, %55 : vector<24x32xf32>
    %cst_29 = arith.constant 0.000000e+00 : f32
    %57 = vector.broadcast %cst_29 : f32 to vector<24x32xf32>
    %58 = arith.maximumf %56, %57 : vector<24x32xf32>
    %c0_30 = arith.constant 0 : index
    %c0_31 = arith.constant 0 : index
    %59 = vector.load %arg10[%c0_30, %c0_31] : memref<1x32xbf16, #tpu.memory_space<vmem>>, vector<1x32xbf16>
    %60 = arith.truncf %58 : vector<24x32xf32> to vector<24x32xbf16>
    %cst_32 = arith.constant dense<0.000000e+00> : vector<1x24xf32>
    %61 = tpu.matmul %59, %60, %cst_32 {dimension_numbers = #tpu.dot_dimension_numbers<[1], [1], [0], [0], [0, 0, 1, 0], [], []>} : vector<1x32xbf16>, vector<24x32xbf16>, vector<1x24xf32> -> vector<1x24xf32>
    %c0_33 = arith.constant 0 : index
    %c0_34 = arith.constant 0 : index
    %62 = vector.load %arg11[%c0_33, %c0_34] : memref<1x1xf32, #tpu.memory_space<vmem>>, vector<1x1xf32>
    %63 = vector.broadcast %62 : vector<1x1xf32> to vector<1x24xf32>
    %64 = arith.addf %61, %63 : vector<1x24xf32>
    %c0_35 = arith.constant 0 : index
    %c0_36 = arith.constant 0 : index
    %65 = vector.load %arg12[%c0_35, %c0_36] : memref<1x24xf32, #tpu.memory_space<vmem>>, vector<1x24xf32>
    tpu.vector_store %arg12[%c0_35, %c0_36], %64 {strides = array<i32>} : memref<1x24xf32, #tpu.memory_space<vmem>>, vector<1x24xf32>,
    return
  }
}

</mosaic_0001>

<llo_original>
// kernel: tpu_custom_call.1
$region0: #{tpu_custom_call.1}
  #allocation0 [shape = 'u32[]', space=smem, size = 0x4, offset = 0x4, fixed_abs, tag = 'smem constant byte address 0x4 - core index']
  #allocation1 [shape = 'u32[144,128]{1,0:T(1,128)}', space=vmem, size = 0x12000, scoped, tag = 'internal scratch']
  #allocation2 [shape = 'f32[1]{0:T(128)S(6)}', space=smem, size = 0x200, scoped, tag = 'scoped memory for tpu_custom_call.1']
  #allocation3 [shape = 'f32[1,1]{1,0:T(1,128)S(1)}', space=vmem, size = 0x200, scoped, tag = 'scoped memory for tpu_custom_call.1']
  %s0 = inlined_call_operand.<no memory space> [shape: f32[1], index: 0, kind: input, shape index: {}]
  %s1 = inlined_call_operand.vmem [shape: bf16[1,16,8], index: 1, kind: input, shape index: {}]
  %s2 = inlined_call_operand.vmem [shape: bf16[16,16], index: 2, kind: input, shape index: {}]
  %s3 = inlined_call_operand.vmem [shape: bf16[40,64], index: 3, kind: input, shape index: {}]
  %s4 = inlined_call_operand.vmem [shape: f32[1,64], index: 4, kind: input, shape index: {}]
  %s5 = inlined_call_operand.vmem [shape: bf16[40,32], index: 5, kind: input, shape index: {}]
  %s6 = inlined_call_operand.vmem [shape: f32[1,32], index: 6, kind: input, shape index: {}]
  %s7 = inlined_call_operand.vmem [shape: s32[48,1], index: 7, kind: input, shape index: {}]
  %s8 = inlined_call_operand.vmem [shape: bf16[64,32], index: 8, kind: input, shape index: {}]
  %s9 = inlined_call_operand.vmem [shape: f32[1,32], index: 9, kind: input, shape index: {}]
  %s10 = inlined_call_operand.vmem [shape: bf16[1,32], index: 10, kind: input, shape index: {}]
  %s11 = inlined_call_operand.<no memory space> [shape: f32[1,1], index: 11, kind: input, shape index: {}]
  %s12 = inlined_call_operand.hbm [shape: f32[1,24], index: 12, kind: output, shape index: {}]
  %s13 = sld [smem:[#allocation0]]
  $region58: #{tpu_custom_call.1} parent=0
    _
  %s15 = ssub.s32 1, %s13
  %s16 = scalar_select 0, %s15, %s13
  %17 = sst [smem:[#allocation2]] %s0
  %v18 = vstv %s11
  %19 = vst [vmem:[#allocation3] sm:$0x1] %v18
  $region1: #{tpu_custom_call.1} parent=0
    #allocation4 [shape = 'u8[512]{0}', space=vmem, size = 0x400, scoped, tag = 'output window, operand 0, single buffered']
    #allocation5 [shape = 's32[1]{0}', space=sflag, size = 0x4, scoped, tag = 'scoped memory for tpu_custom_call.1']
    %20 = vsyncpa [#allocation5], 0
    // Predicated region
    $region2: #{tpu_custom_call.1} parent=1 // pred_check
      _
    $region3: #{tpu_custom_call.1} parent=1 // pred_check_branch
      %22 = sbr.rel (0) target = $region5
    $region4: #{tpu_custom_call.1} parent=1 // pred_region
      _
    $region5: #{tpu_custom_call.1} parent=1 // pred_fallthru
      _
    // Predicated region
    $region6: #{tpu_custom_call.1} parent=1 // pred_check
      _
    $region7: #{tpu_custom_call.1} parent=1 // pred_check_branch
      %24 = sbr.rel (0) target = $region9
    $region8: #{tpu_custom_call.1} parent=1 // pred_region
      _
    $region9: #{tpu_custom_call.1} parent=1 // pred_fallthru
      _
    // Predicated region
    $region10: #{tpu_custom_call.1} parent=1 // pred_check
      _
    $region11: #{tpu_custom_call.1} parent=1 // pred_check_branch
      %26 = sbr.rel (0) target = $region13
    $region12: #{tpu_custom_call.1} parent=1 // pred_region
      _
    $region13: #{tpu_custom_call.1} parent=1 // pred_fallthru
      _
    // Predicated region
    $region14: #{tpu_custom_call.1} parent=1 // pred_check
      _
    $region15: #{tpu_custom_call.1} parent=1 // pred_check_branch
      %28 = sbr.rel (0) target = $region17
    $region16: #{tpu_custom_call.1} parent=1 // pred_region
      _
    $region17: #{tpu_custom_call.1} parent=1 // pred_fallthru
      _
    // Predicated region
    $region18: #{tpu_custom_call.1} parent=1 // pred_check
      _
    $region19: #{tpu_custom_call.1} parent=1 // pred_check_branch
      %30 = sbr.rel (0) target = $region21
    $region20: #{tpu_custom_call.1} parent=1 // pred_region
      _
    $region21: #{tpu_custom_call.1} parent=1 // pred_fallthru
      _
    // Predicated region
    $region22: #{tpu_custom_call.1} parent=1 // pred_check
      _
    $region23: #{tpu_custom_call.1} parent=1 // pred_check_branch
      %32 = sbr.rel (0) target = $region25
    $region24: #{tpu_custom_call.1} parent=1 // pred_region
      _
    $region25: #{tpu_custom_call.1} parent=1 // pred_fallthru
      _
    // Predicated region
    $region26: #{tpu_custom_call.1} parent=1 // pred_check
      _
    $region27: #{tpu_custom_call.1} parent=1 // pred_check_branch
      %34 = sbr.rel (0) target = $region29
    $region28: #{tpu_custom_call.1} parent=1 // pred_region
      _
    $region29: #{tpu_custom_call.1} parent=1 // pred_fallthru
      _
    // Predicated region
    $region30: #{tpu_custom_call.1} parent=1 // pred_check
      _
    $region31: #{tpu_custom_call.1} parent=1 // pred_check_branch
      %36 = sbr.rel (0) target = $region33
    $region32: #{tpu_custom_call.1} parent=1 // pred_region
      _
    $region33: #{tpu_custom_call.1} parent=1 // pred_fallthru
      _
    // Predicated region
    $region34: #{tpu_custom_call.1} parent=1 // pred_check
      _
    $region35: #{tpu_custom_call.1} parent=1 // pred_check_branch
      %38 = sbr.rel (0) target = $region37
    $region36: #{tpu_custom_call.1} parent=1 // pred_region
      _
    $region37: #{tpu_custom_call.1} parent=1 // pred_fallthru
      _
    // Predicated region
    $region38: #{tpu_custom_call.1} parent=1 // pred_check
      _
    $region39: #{tpu_custom_call.1} parent=1 // pred_check_branch
      %40 = sbr.rel (0) target = $region41
    $region40: #{tpu_custom_call.1} parent=1 // pred_region
      _
    $region41: #{tpu_custom_call.1} parent=1 // pred_fallthru
      _
    // Predicated region
    $region42: #{tpu_custom_call.1} parent=1 // pred_check
      _
    $region43: #{tpu_custom_call.1} parent=1 // pred_check_branch
      %42 = sbr.rel (0) target = $region45
    $region44: #{tpu_custom_call.1} parent=1 // pred_region
      _
    $region45: #{tpu_custom_call.1} parent=1 // pred_fallthru
      _
    // Predicated region
    $region46: #{tpu_custom_call.1} parent=1 // pred_check
      _
    $region47: #{tpu_custom_call.1} parent=1 // pred_check_branch
      %44 = sbr.rel (0) target = $region49
    $region48: #{tpu_custom_call.1} parent=1 // pred_region
      _
    $region49: #{tpu_custom_call.1} parent=1 // pred_fallthru
      _
    %v46 = vld [vmem:[%s2] sm:$0xf]
    %v47 = vld [vmem:[%s2 + $0x4] sm:$0xf]
    %v48 = vld [vmem:[%s3] sm:$0xf]
    %v49 = vld [vmem:[%s3 + $0x4] sm:$0xf]
    %v50 = vld [vmem:[%s3 + $0x8] sm:$0xf]
    %v51 = vld [vmem:[%s3 + $0xc] sm:$0xf]
    %v52 = vld [vmem:[%s3 + $0x10] sm:$0xf]
    %v53 = vld [vmem:[%s4] sm:$0x1]
    %v54 = vld [vmem:[%s5] sm:$0xf]
    %v55 = vld [vmem:[%s5 + $0x4] sm:$0xf]
    %v56 = vld [vmem:[%s5 + $0x8] sm:$0xf]
    %v57 = vld [vmem:[%s5 + $0xc] sm:$0xf]
    %v58 = vld [vmem:[%s5 + $0x10] sm:$0xf]
    %v59 = vld [vmem:[%s6] sm:$0x1]
    %v60 = vld [vmem:[%s1] sm:$0xf]
    %v61 = vld [vmem:[%s1 + $0x4] sm:$0xf]
    %v64 = vunpack.c.l.b16 %v46
    %v65 = vunpack.c.l.b16 %v47
    %v66 = vpack.c.b16 %v65, %v64
    %v69 = vunpack.c.l.b16 %v60
    %v70 = vunpack.c.l.b16 %v61
    %v71 = vpack.c.b16 %v70, %v69
    %vm73 = vcmask 130048
    %v75 = vsel %vm73, %v66, 0
    %77 = vmatprep.subr.bf16.mxu0 0
    %78 = vmatpush1.bf16.msra.mxu0 %v71
    %79 = vmatprep.subr.bf16.mxu0 0
    %80 = vmatpush1.bf16.msra.mxu0 0
    %81 = vmatprep.subr.bf16.mxu0 0
    %82 = vmatpush1.bf16.msra.mxu0 0
    %83 = vmatprep.subr.bf16.mxu0 0
    %84 = vmatpush1.bf16.msra.mxu0 0
    %85 = vmatprep.subr.bf16.mxu0 0
    %86 = vmatpush1.bf16.msra.mxu0 0
    %87 = vmatprep.subr.bf16.mxu0 0
    %88 = vmatpush1.bf16.msra.mxu0 0
    %89 = vmatprep.subr.bf16.mxu0 0
    %90 = vmatpush1.bf16.msra.mxu0 0
    %91 = vmatprep.subr.bf16.mxu0 0
    %92 = vmatpush1.bf16.msra.mxu0 0
    %93 = vmatprep.subr.bf16.mxu0 0
    %94 = vmatpush1.bf16.msra.mxu0 0
    %95 = vmatprep.subr.bf16.mxu0 0
    %96 = vmatpush1.bf16.msra.mxu0 0
    %97 = vmatprep.subr.bf16.mxu0 0
    %98 = vmatpush1.bf16.msra.mxu0 0
    %99 = vmatprep.subr.bf16.mxu0 0
    %100 = vmatpush1.bf16.msra.mxu0 0
    %101 = vmatprep.subr.bf16.mxu0 0
    %102 = vmatpush1.bf16.msra.mxu0 0
    %103 = vmatprep.subr.bf16.mxu0 0
    %104 = vmatpush1.bf16.msra.mxu0 0
    %105 = vmatprep.subr.bf16.mxu0 0
    %106 = vmatpush1.bf16.msra.mxu0 0
    %107 = vmatprep.subr.bf16.mxu0 0
    %108 = vmatpush1.bf16.msra.mxu0 0
    %109 = vmatprep.mubr.bf16.mxu0 0
    %110 = vmatmul.mubr.bf16.gmra.mrb[0].mxu0 %v75
    %v111 = vpop.f32.mrb[0].mxu0
    %v112 = vadd.f32 0.0, %v111
    %v113 = vpop.f32.mrb[0].mxu0
    %v114 = vpop.f32.mrb[0].mxu0
    %v115 = vadd.f32 0.0, %v114
    %v116 = vpop.f32.mrb[0].mxu0
    %117 = vdwg.mxu0
    %vm118 = vcmask 64512
    %v119 = vsel %vm118, %v112, 0.0
    %v120 = vsel %vm118, %v115, 0.0
    %v121 = vpack.c.bf16 %v120, %v119
    %v123 = vlaneseq
    %v124 = vshrl.u32 %v123, 7
    %v125 = vsub.s32 0, %v124
    %v126 = vrot.slane %v53, %v125
    %v133 = vunpack.c.l.b16 %v48
    %v134 = vunpack.c.l.b16 %v49
    %v135 = vunpack.c.l.b16 %v50
    %v136 = vunpack.c.l.b16 %v51
    %v137 = vunpack.c.l.b16 %v52
    %v138 = vpack.c.b16 %v134, %v133
    %v139 = vpack.c.b16 %v136, %v135
    %v140 = vpack.c.b16 %v137, %v137
    %vm143 = vcmask 326656
    %v145 = vsel %vm143, %v121, 0
    %vm147 = vcmask 1043456
    %v149 = vsel %vm147, %v140, 0
    %151 = vmatprep.subr.bf16.mxu0 0
    %152 = vmatpush1.bf16.msra.mxu0 %v138
    %153 = vmatprep.subr.bf16.mxu0 0
    %154 = vmatpush1.bf16.msra.mxu0 %v139
    %155 = vmatprep.subr.bf16.mxu0 0
    %156 = vmatpush1.bf16.msra.mxu0 %v149
    %157 = vmatprep.subr.bf16.mxu0 0
    %158 = vmatpush1.bf16.msra.mxu0 0
    %159 = vmatprep.subr.bf16.mxu0 0
    %160 = vmatpush1.bf16.msra.mxu0 0
    %161 = vmatprep.subr.bf16.mxu0 0
    %162 = vmatpush1.bf16.msra.mxu0 0
    %163 = vmatprep.subr.bf16.mxu0 0
    %164 = vmatpush1.bf16.msra.mxu0 0
    %165 = vmatprep.subr.bf16.mxu0 0
    %166 = vmatpush1.bf16.msra.mxu0 0
    %167 = vmatprep.subr.bf16.mxu0 0
    %168 = vmatpush1.bf16.msra.mxu0 0
    %169 = vmatprep.subr.bf16.mxu0 0
    %170 = vmatpush1.bf16.msra.mxu0 0
    %171 = vmatprep.subr.bf16.mxu0 0
    %172 = vmatpush1.bf16.msra.mxu0 0
    %173 = vmatprep.subr.bf16.mxu0 0
    %174 = vmatpush1.bf16.msra.mxu0 0
    %175 = vmatprep.subr.bf16.mxu0 0
    %176 = vmatpush1.bf16.msra.mxu0 0
    %177 = vmatprep.subr.bf16.mxu0 0
    %178 = vmatpush1.bf16.msra.mxu0 0
    %179 = vmatprep.subr.bf16.mxu0 0
    %180 = vmatpush1.bf16.msra.mxu0 0
    %181 = vmatprep.subr.bf16.mxu0 0
    %182 = vmatpush1.bf16.msra.mxu0 0
    %183 = vmatprep.mubr.bf16.mxu0 0
    %184 = vmatmul.mubr.bf16.gmra.mrb[0].mxu0 %v145
    %v185 = vpop.f32.mrb[0].mxu0
    %v186 = vadd.f32 %v126, %v185
    %v187 = vpop.f32.mrb[0].mxu0
    %v188 = vpop.f32.mrb[0].mxu0
    %v189 = vadd.f32 %v126, %v188
    %v190 = vpop.f32.mrb[0].mxu0
    %191 = vdwg.mxu0
    %v192 = vxor.u32 %v186, 2147483648
    %v193 = vxor.u32 %v189, 2147483648
    %v194 = vmul.f32 %v192, 1.442695
    %v195 = vpow.pop %v194
    %v196 = vmul.f32 %v193, 1.442695
    %v197 = vpow.pop %v196
    %v198 = vadd.f32 %v195, 1.0
    %v199 = vadd.f32 %v197, 1.0
    %v200 = vrcp.pop %v198
    %v201 = vmul.f32 1.0, %v200
    %v202 = vrcp.pop %v199
    %v203 = vmul.f32 1.0, %v202
    %v204 = vmul.f32 %v201, 0.0
    %v205 = vmul.f32 %v203, 0.0
    %208 = vrot.lane.b32.xlu0 %v204, 104
    %v209 = vpop.permute.xlu0 %208
    %210 = vrot.lane.b32.xlu0 %v205, 104
    %v211 = vpop.permute.xlu0 %210
    %v214 = vsel %vm118, %v112, %v209
    %v215 = vsel %vm118, %v115, %v211
    %v216 = vpack.c.bf16 %v215, %v214
    %v218 = vlaneseq
    %v219 = vshrl.u32 %v218, 7
    %v220 = vsub.s32 0, %v219
    %v221 = vrot.slane %v59, %v220
    %v228 = vunpack.c.l.b16 %v54
    %v229 = vunpack.c.l.b16 %v55
    %v230 = vunpack.c.l.b16 %v56
    %v231 = vunpack.c.l.b16 %v57
    %v232 = vunpack.c.l.b16 %v58
    %v233 = vpack.c.b16 %v229, %v228
    %v234 = vpack.c.b16 %v231, %v230
    %v235 = vpack.c.b16 %v232, %v232
    %v239 = vsel %vm143, %v216, 0
    %v242 = vsel %vm147, %v235, 0
    %244 = vmatprep.subr.bf16.mxu0 0
    %245 = vmatpush1.bf16.msra.mxu0 %v233
    %246 = vmatprep.subr.bf16.mxu0 0
    %247 = vmatpush1.bf16.msra.mxu0 %v234
    %248 = vmatprep.subr.bf16.mxu0 0
    %249 = vmatpush1.bf16.msra.mxu0 %v242
    %250 = vmatprep.subr.bf16.mxu0 0
    %251 = vmatpush1.bf16.msra.mxu0 0
    %252 = vmatprep.subr.bf16.mxu0 0
    %253 = vmatpush1.bf16.msra.mxu0 0
    %254 = vmatprep.subr.bf16.mxu0 0
    %255 = vmatpush1.bf16.msra.mxu0 0
    %256 = vmatprep.subr.bf16.mxu0 0
    %257 = vmatpush1.bf16.msra.mxu0 0
    %258 = vmatprep.subr.bf16.mxu0 0
    %259 = vmatpush1.bf16.msra.mxu0 0
    %260 = vmatprep.subr.bf16.mxu0 0
    %261 = vmatpush1.bf16.msra.mxu0 0
    %262 = vmatprep.subr.bf16.mxu0 0
    %263 = vmatpush1.bf16.msra.mxu0 0
    %264 = vmatprep.subr.bf16.mxu0 0
    %265 = vmatpush1.bf16.msra.mxu0 0
    %266 = vmatprep.subr.bf16.mxu0 0
    %267 = vmatpush1.bf16.msra.mxu0 0
    %268 = vmatprep.subr.bf16.mxu0 0
    %269 = vmatpush1.bf16.msra.mxu0 0
    %270 = vmatprep.subr.bf16.mxu0 0
    %271 = vmatpush1.bf16.msra.mxu0 0
    %272 = vmatprep.subr.bf16.mxu0 0
    %273 = vmatpush1.bf16.msra.mxu0 0
    %274 = vmatprep.subr.bf16.mxu0 0
    %275 = vmatpush1.bf16.msra.mxu0 0
    %276 = vmatprep.mubr.bf16.mxu0 0
    %277 = vmatmul.mubr.bf16.gmra.mrb[0].mxu0 %v239
    %v278 = vpop.f32.mrb[0].mxu0
    %v279 = vadd.f32 %v221, %v278
    %v280 = vpop.f32.mrb[0].mxu0
    %v281 = vpop.f32.mrb[0].mxu0
    %v282 = vadd.f32 %v221, %v281
    %v283 = vpop.f32.mrb[0].mxu0
    %284 = vdwg.mxu0
    %v285 = vtanh.pop %v279
    %v286 = vtanh.pop %v282
    %v287 = vsub.f32 1.0, %v201
    %v288 = vsub.f32 1.0, %v203
    %v289 = vmul.f32 %v287, %v285
    %v290 = vmul.f32 %v288, %v286
    %v291 = vadd.f32 %v204, %v289
    %v292 = vadd.f32 %v205, %v290
    %s293 = sld [smem:[#allocation2]]
    %v294 = vstv %s293
    %v295 = vmul.f32 %v294, %v291
    %v296 = vmul.f32 %v294, %v292
    %v297 = vadd.f32 %v295, 0.0
    %v298 = vadd.f32 %v296, 0.0
    %v299 = vlaneseq
    %v300 = vand.u32 %v299, 127
    %v301 = vld [vmem:[%s7] sm:$0xff]
    %v302 = vld [vmem:[%s7 + $0x8] sm:$0xff]
    %v303 = vld [vmem:[%s7 + $0x10] sm:$0xff]
    %v304 = vld [vmem:[%s7 + $0x18] sm:$0xff]
    %v305 = vld [vmem:[%s7 + $0x20] sm:$0xff]
    %v306 = vld [vmem:[%s7 + $0x28] sm:$0xff]
    %307 = vset.pattern.permute.xlu0 0
    %308 = vperm.xlu0 %307, %v301
    %v309 = vpop.permute.xlu0 %308
    %310 = vset.pattern.permute.xlu0 0
    %311 = vperm.xlu0 %310, %v302
    %v312 = vpop.permute.xlu0 %311
    %313 = vset.pattern.permute.xlu0 0
    %314 = vperm.xlu0 %313, %v303
    %v315 = vpop.permute.xlu0 %314
    %316 = vset.pattern.permute.xlu0 0
    %317 = vperm.xlu0 %316, %v304
    %v318 = vpop.permute.xlu0 %317
    %319 = vset.pattern.permute.xlu0 0
    %320 = vperm.xlu0 %319, %v305
    %v321 = vpop.permute.xlu0 %320
    %322 = vset.pattern.permute.xlu0 0
    %323 = vperm.xlu0 %322, %v306
    %v324 = vpop.permute.xlu0 %323
    %vm325 = vcmp.eq.s32.totalorder %v300, %v309
    %vm326 = vcmp.eq.s32.totalorder %v300, %v312
    %vm327 = vcmp.eq.s32.totalorder %v300, %v315
    %vm328 = vcmp.eq.s32.totalorder %v300, %v318
    %vm329 = vcmp.eq.s32.totalorder %v300, %v321
    %vm330 = vcmp.eq.s32.totalorder %v300, %v324
    %v331 = vsel %vm325, 1.0, 0.0
    %v332 = vsel %vm326, 1.0, 0.0
    %v333 = vsel %vm327, 1.0, 0.0
    %v334 = vsel %vm328, 1.0, 0.0
    %v335 = vsel %vm329, 1.0, 0.0
    %v336 = vsel %vm330, 1.0, 0.0
    %v337 = vpack.c.bf16 %v332, %v331
    %v338 = vpack.c.bf16 %v334, %v333
    %v339 = vpack.c.bf16 %v336, %v335
    %v340 = vpack.c.bf16 %v298, %v297
    %v342 = vsel %vm73, %v337, 0
    %v345 = vsel %vm73, %v338, 0
    %v348 = vsel %vm73, %v339, 0
    %350 = vmatprep.subr.bf16.mxu0 0
    %351 = vmatpush1.bf16.msra.mxu0 %v340
    %352 = vmatprep.subr.bf16.mxu0 0
    %353 = vmatpush1.bf16.msra.mxu0 0
    %354 = vmatprep.subr.bf16.mxu0 0
    %355 = vmatpush1.bf16.msra.mxu0 0
    %356 = vmatprep.subr.bf16.mxu0 0
    %357 = vmatpush1.bf16.msra.mxu0 0
    %358 = vmatprep.subr.bf16.mxu0 0
    %359 = vmatpush1.bf16.msra.mxu0 0
    %360 = vmatprep.subr.bf16.mxu0 0
    %361 = vmatpush1.bf16.msra.mxu0 0
    %362 = vmatprep.subr.bf16.mxu0 0
    %363 = vmatpush1.bf16.msra.mxu0 0
    %364 = vmatprep.subr.bf16.mxu0 0
    %365 = vmatpush1.bf16.msra.mxu0 0
    %366 = vmatprep.subr.bf16.mxu0 0
    %367 = vmatpush1.bf16.msra.mxu0 0
    %368 = vmatprep.subr.bf16.mxu0 0
    %369 = vmatpush1.bf16.msra.mxu0 0
    %370 = vmatprep.subr.bf16.mxu0 0
    %371 = vmatpush1.bf16.msra.mxu0 0
    %372 = vmatprep.subr.bf16.mxu0 0
    %373 = vmatpush1.bf16.msra.mxu0 0
    %374 = vmatprep.subr.bf16.mxu0 0
    %375 = vmatpush1.bf16.msra.mxu0 0
    %376 = vmatprep.subr.bf16.mxu0 0
    %377 = vmatpush1.bf16.msra.mxu0 0
    %378 = vmatprep.subr.bf16.mxu0 0
    %379 = vmatpush1.bf16.msra.mxu0 0
    %380 = vmatprep.subr.bf16.mxu0 0
    %381 = vmatpush1.bf16.msra.mxu0 0
    %382 = vmatprep.mubr.bf16.mxu0 0
    %383 = vmatmul.mubr.bf16.gmra.mrb[0].mxu0 %v342
    %v384 = vpop.f32.mrb[0].mxu0
    %v385 = vadd.f32 0.0, %v384
    %v386 = vpop.f32.mrb[0].mxu0
    %v387 = vpop.f32.mrb[0].mxu0
    %v388 = vadd.f32 0.0, %v387
    %v389 = vpop.f32.mrb[0].mxu0
    %390 = vmatprep.mubr.bf16.mxu0 0
    %391 = vmatmul.mubr.bf16.gmra.mrb[0].mxu0 %v345
    %v392 = vpop.f32.mrb[0].mxu0
    %v393 = vadd.f32 0.0, %v392
    %v394 = vpop.f32.mrb[0].mxu0
    %v395 = vpop.f32.mrb[0].mxu0
    %v396 = vadd.f32 0.0, %v395
    %v397 = vpop.f32.mrb[0].mxu0
    %398 = vmatprep.mubr.bf16.mxu0 0
    %399 = vmatmul.mubr.bf16.gmra.mrb[0].mxu0 %v348
    %v400 = vpop.f32.mrb[0].mxu0
    %v401 = vadd.f32 0.0, %v400
    %v402 = vpop.f32.mrb[0].mxu0
    %v403 = vpop.f32.mrb[0].mxu0
    %v404 = vadd.f32 0.0, %v403
    %v405 = vpop.f32.mrb[0].mxu0
    %406 = vdwg.mxu0
    %410 = vrot.lane.b32.xlu0 %v396, 32
    %v411 = vpop.permute.xlu0 %410
    %412 = vrot.lane.b32.xlu0 %v401, 32
    %v413 = vpop.permute.xlu0 %412
    %414 = vrot.lane.b32.xlu0 %v404, 32
    %v415 = vpop.permute.xlu0 %414
    %vm419 = vcmask 261120
    %v420 = vsel %vm419, %v385, %v411
    %v421 = vsel %vm419, %v388, %v413
    %v422 = vsel %vm419, %v393, %v415
    %v423 = vld [vmem:[%s8] sm:$0xf]
    %v424 = vld [vmem:[%s8 + $0x4] sm:$0xf]
    %v425 = vld [vmem:[%s8 + $0x8] sm:$0xf]
    %v426 = vld [vmem:[%s8 + $0xc] sm:$0xf]
    %v427 = vld [vmem:[%s8 + $0x10] sm:$0xf]
    %v428 = vld [vmem:[%s8 + $0x14] sm:$0xf]
    %v429 = vld [vmem:[%s8 + $0x18] sm:$0xf]
    %v430 = vld [vmem:[%s8 + $0x1c] sm:$0xf]
    %v431 = vpack.c.bf16 %v421, %v420
    %v432 = vpack.c.bf16 %v422, %v422
    %v433 = vld [vmem:[%s9] sm:$0x1]
    %v435 = vlaneseq
    %v436 = vshrl.u32 %v435, 7
    %v437 = vsub.s32 0, %v436
    %v438 = vrot.slane %v433, %v437
    %v448 = vunpack.c.l.b16 %v423
    %v449 = vunpack.c.l.b16 %v424
    %v450 = vunpack.c.l.b16 %v425
    %v451 = vunpack.c.l.b16 %v426
    %v452 = vunpack.c.l.b16 %v427
    %v453 = vunpack.c.l.b16 %v428
    %v454 = vunpack.c.l.b16 %v429
    %v455 = vunpack.c.l.b16 %v430
    %v456 = vpack.c.b16 %v449, %v448
    %v457 = vpack.c.b16 %v451, %v450
    %v458 = vpack.c.b16 %v453, %v452
    %v459 = vpack.c.b16 %v455, %v454
    %vm464 = vcmask 523264
    %v466 = vsel %vm464, %v431, 0
    %v469 = vsel %vm464, %v432, 0
    %471 = vmatprep.subr.bf16.mxu0 0
    %472 = vmatpush1.bf16.msra.mxu0 %v456
    %473 = vmatprep.subr.bf16.mxu0 0
    %474 = vmatpush1.bf16.msra.mxu0 %v457
    %475 = vmatprep.subr.bf16.mxu0 0
    %476 = vmatpush1.bf16.msra.mxu0 %v458
    %477 = vmatprep.subr.bf16.mxu0 0
    %478 = vmatpush1.bf16.msra.mxu0 %v459
    %479 = vmatprep.subr.bf16.mxu0 0
    %480 = vmatpush1.bf16.msra.mxu0 0
    %481 = vmatprep.subr.bf16.mxu0 0
    %482 = vmatpush1.bf16.msra.mxu0 0
    %483 = vmatprep.subr.bf16.mxu0 0
    %484 = vmatpush1.bf16.msra.mxu0 0
    %485 = vmatprep.subr.bf16.mxu0 0
    %486 = vmatpush1.bf16.msra.mxu0 0
    %487 = vmatprep.subr.bf16.mxu0 0
    %488 = vmatpush1.bf16.msra.mxu0 0
    %489 = vmatprep.subr.bf16.mxu0 0
    %490 = vmatpush1.bf16.msra.mxu0 0
    %491 = vmatprep.subr.bf16.mxu0 0
    %492 = vmatpush1.bf16.msra.mxu0 0
    %493 = vmatprep.subr.bf16.mxu0 0
    %494 = vmatpush1.bf16.msra.mxu0 0
    %495 = vmatprep.subr.bf16.mxu0 0
    %496 = vmatpush1.bf16.msra.mxu0 0
    %497 = vmatprep.subr.bf16.mxu0 0
    %498 = vmatpush1.bf16.msra.mxu0 0
    %499 = vmatprep.subr.bf16.mxu0 0
    %500 = vmatpush1.bf16.msra.mxu0 0
    %501 = vmatprep.subr.bf16.mxu0 0
    %502 = vmatpush1.bf16.msra.mxu0 0
    %503 = vmatprep.mubr.bf16.mxu0 0
    %504 = vmatmul.mubr.bf16.gmra.mrb[0].mxu0 %v466
    %v505 = vpop.f32.mrb[0].mxu0
    %v506 = vadd.f32 %v438, %v505
    %v507 = vpop.f32.mrb[0].mxu0
    %v508 = vpop.f32.mrb[0].mxu0
    %v509 = vadd.f32 %v438, %v508
    %v510 = vpop.f32.mrb[0].mxu0
    %511 = vmatprep.mubr.bf16.mxu0 0
    %512 = vmatmul.mubr.bf16.gmra.mrb[0].mxu0 %v469
    %v513 = vpop.f32.mrb[0].mxu0
    %v514 = vadd.f32 %v438, %v513
    %v515 = vpop.f32.mrb[0].mxu0
    %v516 = vpop.f32.mrb[0].mxu0
    %v517 = vpop.f32.mrb[0].mxu0
    %518 = vdwg.mxu0
    %v519 = vmax.f32 %v506, 0.0
    %v520 = vmax.f32 %v509, 0.0
    %v521 = vmax.f32 %v514, 0.0
    %v522 = vld [vmem:[%s10] sm:$0x1]
    %v523 = vpack.c.bf16 %v520, %v519
    %v524 = vpack.c.bf16 %v521, %v521
    %v525 = vld [vmem:[#allocation3] sm:$0x1]
    %527 = vset.pattern.permute.xlu0 0
    %528 = vperm.xlu0 %527, %v525
    %v529 = vpop.permute.xlu0 %528
    %v531 = vlaneseq
    %v532 = vshrl.u32 %v531, 7
    %v533 = vsub.s32 0, %v532
    %v534 = vrot.slane %v529, %v533
    %v536 = vsel %vm419, %v522, 0
    %v539 = vsel %vm419, %v523, 0
    %v542 = vsel %vm419, %v524, 0
    %544 = vmatprep.subr.bf16.mxu0 0
    %545 = vmatpush1.bf16.xpose.msra.mxu0 %v539
    %546 = vmatprep.subr.bf16.mxu0 0
    %547 = vmatpush1.bf16.xpose.msra.mxu0 %v542
    %548 = vmatprep.subr.bf16.mxu0 0
    %549 = vmatpush1.bf16.xpose.msra.mxu0 0
    %550 = vmatprep.subr.bf16.mxu0 0
    %551 = vmatpush1.bf16.xpose.msra.mxu0 0
    %552 = vmatprep.subr.bf16.mxu0 0
    %553 = vmatpush1.bf16.xpose.msra.mxu0 0
    %554 = vmatprep.subr.bf16.mxu0 0
    %555 = vmatpush1.bf16.xpose.msra.mxu0 0
    %556 = vmatprep.subr.bf16.mxu0 0
    %557 = vmatpush1.bf16.xpose.msra.mxu0 0
    %558 = vmatprep.subr.bf16.mxu0 0
    %559 = vmatpush1.bf16.xpose.msra.mxu0 0
    %560 = vmatprep.subr.bf16.mxu0 0
    %561 = vmatpush1.bf16.xpose.msra.mxu0 0
    %562 = vmatprep.subr.bf16.mxu0 0
    %563 = vmatpush1.bf16.xpose.msra.mxu0 0
    %564 = vmatprep.subr.bf16.mxu0 0
    %565 = vmatpush1.bf16.xpose.msra.mxu0 0
    %566 = vmatprep.subr.bf16.mxu0 0
    %567 = vmatpush1.bf16.xpose.msra.mxu0 0
    %568 = vmatprep.subr.bf16.mxu0 0
    %569 = vmatpush1.bf16.xpose.msra.mxu0 0
    %570 = vmatprep.subr.bf16.mxu0 0
    %571 = vmatpush1.bf16.xpose.msra.mxu0 0
    %572 = vmatprep.subr.bf16.mxu0 0
    %573 = vmatpush1.bf16.xpose.msra.mxu0 0
    %574 = vmatprep.subr.bf16.mxu0 0
    %575 = vmatpush1.bf16.xpose.msra.mxu0 0
    %576 = vmatprep.mubr.bf16.mxu0 0
    %577 = vmatmul.mubr.bf16.gmra.mrb[0].mxu0 %v536
    %v578 = vpop.f32.mrb[0].mxu0
    %v579 = vadd.f32 %v534, %v578
    %v580 = vpop.f32.mrb[0].mxu0
    %v581 = vpop.f32.mrb[0].mxu0
    %v582 = vpop.f32.mrb[0].mxu0
    %583 = vdwg.mxu0
    %vm584 = vcmask 188416
    %585 = vst.msk [vmem:[#allocation4] sm:$0x1] %vm584, %v579
    // Predicated region
    $region50: #{tpu_custom_call.1} parent=1 // pred_check
      _
    $region51: #{tpu_custom_call.1} parent=1 // pred_check_branch
      %587 = sbr.rel (0) target = $region53
    $region52: #{tpu_custom_call.1} parent=1 // pred_region
      %s589 = ssub.s32 16, 16
      %590 = vsyncadd [#allocation5], %s589
      %s592 = sshll.u32 [#allocation4], 4
      %s593 = int_to_ptr.vmem [resolvable:$true] %s592
      %595 = dma.vmem_to_hbm [thread:$0]  %s593, 16, %s12, [#allocation5]
    $region53: #{tpu_custom_call.1} parent=1 // pred_fallthru
      _
    // Predicated region
    $region54: #{tpu_custom_call.1} parent=1 // pred_check
      _
    $region55: #{tpu_custom_call.1} parent=1 // pred_check_branch
      %597 = sbr.rel (0) target = $region57
    $region56: #{tpu_custom_call.1} parent=1 // pred_region
      %598 = dma.done [#allocation5], 16
    $region57: #{tpu_custom_call.1} parent=1 // pred_fallthru
      _
    %599 = vsyncpa [#allocation5], 1

</llo_original>
